<compile_context>
chip_gen: v7x
topology: tpu7x:2x2x1
jax: 0.10.0
libtpu: 0.0.40
codegen_flags: <defaults>
</compile_context>

<pallas_src>
import functools

import jax
import jax.numpy as jnp
from jax import lax
from jax.experimental import pallas as pl
from jax.experimental.pallas import tpu as pltpu


def _vsgc_kernel(a_ref, s_ref, x_ref, o_ref, *, k):
    """One feature tile:  h <- A_hat @ h + (alpha*norm_lambd_1)*x, k times.

    a_ref: [N, N]   bf16  pre-normalized propagation matrix (grid-invariant)
    s_ref: [N, 1]   f32   alpha * norm_lambd_1
    x_ref: [N, TF]  f32   feature tile
    o_ref: [N, TF]  f32   output tile
    """
    a = a_ref[...]                      # bf16 MXU operand, loaded once
    x = x_ref[...]                      # f32
    # Hoisted out of the k-loop: broadcast + multiply happen exactly once.
    h_init_s = x * s_ref[...]           # == alpha * h_initial for this tile

    def body(_, h):
        # bf16 x bf16 -> f32 accumulate on the MXU; residual terms are folded
        # into A_hat's diagonal and h_init_s, so this is matmul + one add.
        hp = jnp.dot(a, h.astype(jnp.bfloat16),
                     preferred_element_type=jnp.float32)
        return hp + h_init_s

    # k is a small static hyper-parameter; fori_loop(unroll=True) keeps LLO
    # scheduler visibility while bounding live ranges of the temporaries.
    h = lax.fori_loop(0, k, body, x, unroll=True)
    o_ref[...] = h.astype(o_ref.dtype)


def vsgc_layer(adj, features, *, k=1, alpha=1.0, lambd=1.0, tile_f=256,
               in_degrees=None):
    """Pallas implementation of VSGCLayer.forward (first call, no cache).

    adj:  dense [N, N], adj[dst, src] = 1.0 for edge src->dst, self-loops
          included (matches DGL in_degrees() after add_self_loop).
    in_degrees: optional true in-degree vector [N]; if None it is derived from
          the binary adjacency's row sums.
    """
    n, f = features.shape
    assert adj.shape == (n, n)

    tile_f = min(tile_f, f)
    assert f % tile_f == 0, "feature dim must be a multiple of tile_f"
    assert tile_f % 128 == 0 or tile_f == f, "tile_f must be lane-aligned"

    # ---- normalization: computed once, outside the kernel -----------------
    if in_degrees is None:
        # Binary adjacency with exactly one self-loop per node -> row sums.
        in_degrees = jnp.sum(adj, axis=1)
    degs = in_degrees.astype(jnp.float32).reshape(n, 1) - 1.0
    norm_lambd_1 = 1.0 / (lambd * degs + 1.0)            # [N, 1]
    norm05 = jnp.sqrt(degs + 1.0)                        # [N, 1]
    norm_05 = lax.rsqrt(degs + 1.0)                      # [N, 1]

    # Fold every loop-invariant scale into one propagation matrix:
    #   A_hat = alpha*lambd * D_post @ A @ D_pre + (1-alpha) * I
    row_scale = (alpha * lambd) * norm_lambd_1 * norm05            # [N, 1]
    a_hat = row_scale * adj.astype(jnp.float32) * norm_05.T        # [N, N]
    a_hat = a_hat + (1.0 - alpha) * jnp.eye(n, dtype=jnp.float32)
    a_hat = a_hat.astype(jnp.bfloat16)                             # MXU operand

    init_scale = (alpha * norm_lambd_1).astype(jnp.float32)        # [N, 1]

    # ---- VMEM budget -------------------------------------------------------
    # A_hat is grid-invariant (one DMA total) but the pipeliner still keeps two
    # buffers; budget for both plus double-buffered f32 feature/output tiles
    # and some live temporaries.  Cap at 48 MiB so the same tiling also fits a
    # v7x TensorCore (64 MiB VMEM); floor at 32 MiB (raises v5e's 16 MiB default).
    a_bytes = 2 * n * n * a_hat.dtype.itemsize
    tile_bytes = 2 * 2 * n * tile_f * 4
    live_bytes = 4 * n * tile_f * 4 + 2 * n * 4
    vmem_limit = min(max(2 * (a_bytes + tile_bytes + live_bytes), 32 << 20),
                     48 << 20)

    cost = pl.CostEstimate(
        flops=2 * k * n * n * f,
        transcendentals=0,
        bytes_accessed=(a_hat.size * a_hat.dtype.itemsize
                        + 2 * n * f * 4 + n * 4),
    )

    kernel = functools.partial(_vsgc_kernel, k=k)

    return pl.pallas_call(
        kernel,
        out_shape=jax.ShapeDtypeStruct((n, f), features.dtype),
        grid_spec=pltpu.PrefetchScalarGridSpec(
            num_scalar_prefetch=0,
            grid=(f // tile_f,),
            in_specs=[
                pl.BlockSpec((n, n), lambda j: (0, 0)),        # A_hat (invariant)
                pl.BlockSpec((n, 1), lambda j: (0, 0)),        # alpha*norm_lambd_1
                pl.BlockSpec((n, tile_f), lambda j: (0, j)),   # feature tile
            ],
            out_specs=pl.BlockSpec((n, tile_f), lambda j: (0, j)),
        ),
        compiler_params=pltpu.CompilerParams(
            dimension_semantics=("parallel",),     # feature tiles independent
            vmem_limit_bytes=vmem_limit,
        ),
        cost_estimate=cost,
    )(a_hat, init_scale, features)


def vsgc_reference(adj, features, *, k=1, alpha=1.0, lambd=1.0):
    """Pure-JAX f32 reference mirroring the PyTorch/DGL forward."""
    degs = jnp.sum(adj, axis=1, keepdims=True) - 1.0
    norm_lambd_1 = 1.0 / (lambd * degs + 1.0)
    norm05 = jnp.sqrt(degs + 1.0)
    norm_05 = (degs + 1.0) ** -0.5
    h = features
    h_pre = h
    h_initial = h * norm_lambd_1
    for _ in range(k):
        h = h * norm_05
        h = adj @ h
        h = h * norm_lambd_1 * norm05
        h = alpha * lambd * h + (1.0 - alpha) * h_pre + alpha * h_initial
        h_pre = h
    return h


if __name__ == "__main__":
    N = 128          # number of graph nodes
    F = 512          # feature dim (two 256-wide lane-dense tiles)
    K = 2
    ALPHA = 0.9
    LAMBD = 1.5

    key = jax.random.PRNGKey(0)
    k_adj, k_feat = jax.random.split(key)

    # Deterministic sparse-ish binary adjacency with self-loops.
    adj = jax.random.bernoulli(k_adj, p=0.05, shape=(N, N)).astype(jnp.float32)
    adj = jnp.maximum(adj, jnp.eye(N, dtype=jnp.float32))

    features = jax.random.normal(k_feat, (N, F), dtype=jnp.float32)

    out = vsgc_layer(adj, features, k=K, alpha=ALPHA, lambd=LAMBD, tile_f=256)
    out = jax.block_until_ready(out)

    ref = vsgc_reference(adj, features, k=K, alpha=ALPHA, lambd=LAMBD)
    assert out.shape == (N, F)
    # bf16 MXU operands introduce a small drift vs. the f32 reference.
    max_err = float(jnp.max(jnp.abs(out - ref)))
    assert jnp.allclose(out, ref, atol=5e-2, rtol=5e-2), f"mismatch: {max_err}"

    print("KERNEL_OK")
</pallas_src>

<mosaic_0001>
module attributes {stable_mosaic.version = 11 : i64} {
  func.func @_vsgc_kernel(%arg0: i32, %arg1: memref<128x128xbf16, #tpu.memory_space<vmem>>, %arg2: memref<128x1xf32, #tpu.memory_space<vmem>>, %arg3: memref<128x256xf32, #tpu.memory_space<vmem>>, %arg4: memref<128x256xf32, #tpu.memory_space<vmem>>) attributes {dimension_semantics = [#tpu.dimension_semantics<parallel>], iteration_bounds = array<i64: 2>, scalar_prefetch = 0 : i64, scratch_operands = 0 : i64, tpu.core_type = #tpu.core_type<tc>, window_params = [{pipeline_mode = #tpu.pipeline_mode<synchronous>, transform_indices = @transform_0, window_bounds = array<i64: 128, 128>}, {pipeline_mode = #tpu.pipeline_mode<synchronous>, transform_indices = @transform_1, window_bounds = array<i64: 128, 1>}, {transform_indices = @transform_2, window_bounds = array<i64: 128, 256>}, {transform_indices = @transform_3, window_bounds = array<i64: 128, 256>}]} {
    %c0 = arith.constant 0 : index
    %c0_0 = arith.constant 0 : index
    %0 = vector.load %arg1[%c0, %c0_0] : memref<128x128xbf16, #tpu.memory_space<vmem>>, vector<128x128xbf16>
    %c0_1 = arith.constant 0 : index
    %c0_2 = arith.constant 0 : index
    %1 = vector.load %arg3[%c0_1, %c0_2] : memref<128x256xf32, #tpu.memory_space<vmem>>, vector<128x256xf32>
    %c0_3 = arith.constant 0 : index
    %c0_4 = arith.constant 0 : index
    %2 = vector.load %arg2[%c0_3, %c0_4] : memref<128x1xf32, #tpu.memory_space<vmem>>, vector<128x1xf32>
    %3 = vector.broadcast %2 : vector<128x1xf32> to vector<128x256xf32>
    %4 = arith.mulf %1, %3 : vector<128x256xf32>
    %c0_i32 = arith.constant 0 : i32
    %5 = arith.truncf %1 : vector<128x256xf32> to vector<128x256xbf16>
    %cst = arith.constant dense<0.000000e+00> : vector<128x256xf32>
    %6 = tpu.matmul %0, %5, %cst {dimension_numbers = #tpu.dot_dimension_numbers<[1], [0], [0], [1], [0, 0, 1, 1], [], []>} : vector<128x128xbf16>, vector<128x256xbf16>, vector<128x256xf32> -> vector<128x256xf32>
    %7 = arith.addf %6, %4 : vector<128x256xf32>
    %c1_i32 = arith.constant 1 : i32
    %8 = arith.truncf %7 : vector<128x256xf32> to vector<128x256xbf16>
    %cst_5 = arith.constant dense<0.000000e+00> : vector<128x256xf32>
    %9 = tpu.matmul %0, %8, %cst_5 {dimension_numbers = #tpu.dot_dimension_numbers<[1], [0], [0], [1], [0, 0, 1, 1], [], []>} : vector<128x128xbf16>, vector<128x256xbf16>, vector<128x256xf32> -> vector<128x256xf32>
    %10 = arith.addf %9, %4 : vector<128x256xf32>
    %c0_6 = arith.constant 0 : index
    %c0_7 = arith.constant 0 : index
    %11 = vector.load %arg4[%c0_6, %c0_7] : memref<128x256xf32, #tpu.memory_space<vmem>>, vector<128x256xf32>
    tpu.vector_store %arg4[%c0_6, %c0_7], %10 {strides = array<i32>} : memref<128x256xf32, #tpu.memory_space<vmem>>, vector<128x256xf32>,
    return
  }
  func.func @transform_0(%arg0: i32) -> (i32, i32) {
    %c0_i32 = arith.constant 0 : i32
    %c0_i32_0 = arith.constant 0 : i32
    %c0_i32_1 = arith.constant 0 : i32
    return %c0_i32, %c0_i32_0 : i32, i32
  }
  func.func @transform_1(%arg0: i32) -> (i32, i32) {
    %c0_i32 = arith.constant 0 : i32
    %c0_i32_0 = arith.constant 0 : i32
    %c0_i32_1 = arith.constant 0 : i32
    return %c0_i32, %c0_i32_0 : i32, i32
  }
  func.func @transform_2(%arg0: i32) -> (i32, i32) {
    %c0_i32 = arith.constant 0 : i32
    %c0_i32_0 = arith.constant 0 : i32
    return %c0_i32, %arg0 : i32, i32
  }
  func.func @transform_3(%arg0: i32) -> (i32, i32) {
    %c0_i32 = arith.constant 0 : i32
    %c0_i32_0 = arith.constant 0 : i32
    return %c0_i32, %arg0 : i32, i32
  }
}

</mosaic_0001>

<llo_original>
// kernel: tpu_custom_call.1
$region0: #{tpu_custom_call.1}
  #allocation0 [shape = 'u32[]', space=smem, size = 0x4, offset = 0x4, fixed_abs, tag = 'smem constant byte address 0x4 - core index']
  #allocation1 [shape = 'u32[144,128]{1,0:T(1,128)}', space=vmem, size = 0x12000, scoped, tag = 'internal scratch']
  %s0 = inlined_call_operand.vmem [shape: bf16[128,128], index: 0, kind: input, shape index: {}]
  %s1 = inlined_call_operand.vmem [shape: f32[128,1], index: 1, kind: input, shape index: {}]
  %s2 = inlined_call_operand.hbm [shape: f32[128,512], index: 2, kind: input, shape index: {}]
  %s3 = inlined_call_operand.hbm [shape: f32[128,512], index: 3, kind: output, shape index: {}]
  %s4 = sld [smem:[#allocation0]]
  $region49: #{tpu_custom_call.1} parent=0
    _
  %s6 = ssub.s32 1, %s4
  %s7 = scalar_select 0, %s6, %s4
  $region1: #{tpu_custom_call.1} parent=0
    #allocation2 [shape = 'u8[262144]{0}', space=vmem, size = 0x40000, scoped, tag = 'input window, operand 2']
    #allocation3 [shape = 's32[2]{0}', space=sflag, size = 0x8, scoped, tag = 'scoped memory for tpu_custom_call.1']
    #allocation4 [shape = 's32[2]{0}', space=sflag, size = 0x8, scoped, tag = 'scoped memory for tpu_custom_call.1']
    #allocation5 [shape = 'u8[262144]{0}', space=vmem, size = 0x40000, scoped, tag = 'output window, operand 0']
    %8 = vsyncpa [#allocation3], 0
    %s9 = scalar_lea.sflag [#allocation3], 1
    %10 = vsyncpa %s9, 0
    %11 = vsyncpa [#allocation4], 0
    %s12 = scalar_lea.sflag [#allocation4], 1
    %13 = vsyncpa %s12, 0
    loop: start=0, step=1, limit=4
    $region2: #{tpu_custom_call.1} parent=1 // loop_pre_header
      _
    $region3: #{tpu_custom_call.1} parent=1 // loop_header
      %s15 = sphi 0, %s19
      %p16 = scmp.ge.s32.totalorder %s15, 4
      %s23 = sphi 0, %s23
      %s25 = sphi 0, %s23
      %s26 = sphi 0, %s25
      %s40 = sphi 0, %s26
      %s44 = sphi 0, %s44
      %s46 = sphi 0, %s44
      %s47 = sphi 0, %s46
      %s61 = sphi 0, %s47
      %s67 = sphi 0, %s69
      %s70 = sphi 0, %s67
      %s71 = sphi 0, %s70
      %s87 = sphi 0, %s71
      %s93 = sphi 0, %s95
      %s96 = sphi 0, %s93
      %s97 = sphi 0, %s96
      %s113 = sphi 0, %s97
    $region4: #{tpu_custom_call.1} parent=1 // loop_header_branch
      %18 = sbr.rel (%p16) target = $region8
    $region5: #{tpu_custom_call.1} parent=1 // loop_body
      %s20 = ssub.s32 %s15, 1
      %s21 = ssub.s32 %s15, 2
      %s22 = sadd.s32 %s15, 1
      %s24 = sadd.s32 %s23, 1
      %p27 = scmp.eq.s32.totalorder %s15, 1
      %p28 = scmp.ne.s32.totalorder %s23, %s25
      %p29 = scmp.eq.s32.totalorder %s15, 0
      %p30 = por %p28, %p29
      %p31 = scmp.ne.s32.totalorder %s23, %s25
      %p32 = scmp.eq.s32.totalorder %s20, 1
      %p33 = por %p31, %p32
      %p34 = scmp.ne.s32.totalorder %s25, %s26
      %p35 = scmp.eq.s32.totalorder %s20, 0
      %p36 = por %p34, %p35
      %p37 = scmp.ne.s32.totalorder %s25, %s26
      %p38 = scmp.eq.s32.totalorder %s21, 1
      %p39 = por %p37, %p38
      %p41 = scmp.ne.s32.totalorder %s26, %s40
      %p42 = scmp.eq.s32.totalorder %s21, 0
      %p43 = por %p41, %p42
      %s45 = sadd.s32 %s44, 1
      %p48 = scmp.eq.s32.totalorder %s15, 1
      %p49 = scmp.ne.s32.totalorder %s44, %s46
      %p50 = scmp.eq.s32.totalorder %s15, 0
      %p51 = por %p49, %p50
      %p52 = scmp.ne.s32.totalorder %s44, %s46
      %p53 = scmp.eq.s32.totalorder %s20, 1
      %p54 = por %p52, %p53
      %p55 = scmp.ne.s32.totalorder %s46, %s47
      %p56 = scmp.eq.s32.totalorder %s20, 0
      %p57 = por %p55, %p56
      %p58 = scmp.ne.s32.totalorder %s46, %s47
      %p59 = scmp.eq.s32.totalorder %s21, 1
      %p60 = por %p58, %p59
      %p62 = scmp.ne.s32.totalorder %s47, %s61
      %p63 = scmp.eq.s32.totalorder %s21, 0
      %p64 = por %p62, %p63
      %s65 = ssub.s32 %s15, %s22
      %p66 = scmp.eq.s32.totalorder %s65, 0
      %s68 = sadd.s32 %s67, 1
      %s69 = scalar_select %p66, %s67, %s68
      %p72 = pneg %p66
      %p73 = scmp.eq.s32.totalorder %s15, 1
      %p74 = por %p72, %p73
      %p75 = scmp.ne.s32.totalorder %s67, %s70
      %p76 = scmp.eq.s32.totalorder %s15, 0
      %p77 = por %p75, %p76
      %p78 = scmp.ne.s32.totalorder %s67, %s70
      %p79 = scmp.eq.s32.totalorder %s20, 1
      %p80 = por %p78, %p79
      %p81 = scmp.ne.s32.totalorder %s70, %s71
      %p82 = scmp.eq.s32.totalorder %s20, 0
      %p83 = por %p81, %p82
      %p84 = scmp.ne.s32.totalorder %s70, %s71
      %p85 = scmp.eq.s32.totalorder %s21, 1
      %p86 = por %p84, %p85
      %p88 = scmp.ne.s32.totalorder %s71, %s87
      %p89 = scmp.eq.s32.totalorder %s21, 0
      %p90 = por %p88, %p89
      %s91 = ssub.s32 %s15, %s22
      %p92 = scmp.eq.s32.totalorder %s91, 0
      %s94 = sadd.s32 %s93, 1
      %s95 = scalar_select %p92, %s93, %s94
      %p98 = pneg %p92
      %p99 = scmp.eq.s32.totalorder %s15, 1
      %p100 = por %p98, %p99
      %p101 = scmp.ne.s32.totalorder %s93, %s96
      %p102 = scmp.eq.s32.totalorder %s15, 0
      %p103 = por %p101, %p102
      %p104 = scmp.ne.s32.totalorder %s93, %s96
      %p105 = scmp.eq.s32.totalorder %s20, 1
      %p106 = por %p104, %p105
      %p107 = scmp.ne.s32.totalorder %s96, %s97
      %p108 = scmp.eq.s32.totalorder %s20, 0
      %p109 = por %p107, %p108
      %p110 = scmp.ne.s32.totalorder %s96, %s97
      %p111 = scmp.eq.s32.totalorder %s21, 1
      %p112 = por %p110, %p111
      %p114 = scmp.ne.s32.totalorder %s97, %s113
      %p115 = scmp.eq.s32.totalorder %s21, 0
      %p116 = por %p114, %p115
      %p117 = scmp.le.s32.totalorder 1, %s15
      %p118 = scmp.lt.s32.totalorder %s15, 3
      %p119 = pnand %p117, %p118
      %p120 = pneg %p119
      // Predicated region
      $region9: #{tpu_custom_call.1} parent=5 // pred_check
        _
      $region10: #{tpu_custom_call.1} parent=5 // pred_check_branch
        %122 = sbr.rel (%p119) target = $region12
      $region11: #{tpu_custom_call.1} parent=5 // pred_region
        %s123 = ssub.s32 %s15, 1
        // Predicated region
        $region13: #{tpu_custom_call.1} parent=11 // pred_check
          %p124 = pneg %p36
        $region14: #{tpu_custom_call.1} parent=11 // pred_check_branch
          %126 = sbr.rel (%p124) target = $region16
        $region15: #{tpu_custom_call.1} parent=11 // pred_region
          _
        $region16: #{tpu_custom_call.1} parent=11 // pred_fallthru
          _
        // Predicated region
        $region17: #{tpu_custom_call.1} parent=11 // pred_check
          %p127 = pneg %p57
        $region18: #{tpu_custom_call.1} parent=11 // pred_check_branch
          %129 = sbr.rel (%p127) target = $region20
        $region19: #{tpu_custom_call.1} parent=11 // pred_region
          _
        $region20: #{tpu_custom_call.1} parent=11 // pred_fallthru
          _
      $region12: #{tpu_custom_call.1} parent=5 // pred_fallthru
        _
      %p130 = scmp.lt.s32.totalorder %s15, 2
      // Predicated region
      $region21: #{tpu_custom_call.1} parent=5 // pred_check
        %p131 = pneg %p130
      $region22: #{tpu_custom_call.1} parent=5 // pred_check_branch
        %133 = sbr.rel (%p131) target = $region24
      $region23: #{tpu_custom_call.1} parent=5 // pred_region
        // Predicated region
        $region25: #{tpu_custom_call.1} parent=23 // pred_check
          %p134 = pneg %p77
        $region26: #{tpu_custom_call.1} parent=23 // pred_check_branch
          %136 = sbr.rel (%p134) target = $region28
        $region27: #{tpu_custom_call.1} parent=23 // pred_region
          %s137 = sand.u32 %s67, 1
          %s138 = scalar_lea.sflag [#allocation3], %s137
          %s139 = sand.u32 %s67, 1
          %s140 = smul.addr %s139, 256
          %s141 = scalar_lea.vmem [#allocation2], %s140
          %s142 = smul.u32 2, %s15
          %s144 = ssub.s32 4096, 4096
          %145 = vsyncadd %s138, %s144
          %s146 = smul.addr %s142, 128
          %s147 = scalar_lea.hbm %s2, %s146
          %s148 = sshll.u32 %s141, 4
          %s149 = int_to_ptr.vmem [resolvable:$true] %s148
          %154 = dma.hbm_to_vmem [thread:$0]  %s147, 4096, %s149, %s138, 512, 256, 16
        $region28: #{tpu_custom_call.1} parent=23 // pred_fallthru
          _
      $region24: #{tpu_custom_call.1} parent=5 // pred_fallthru
        _
      %p155 = scmp.le.s32.totalorder 1, %s15
      %p156 = scmp.lt.s32.totalorder %s15, 3
      %p157 = pnand %p155, %p156
      %p158 = pneg %p157
      // Predicated region
      $region29: #{tpu_custom_call.1} parent=5 // pred_check
        _
      $region30: #{tpu_custom_call.1} parent=5 // pred_check_branch
        %160 = sbr.rel (%p157) target = $region32
      $region31: #{tpu_custom_call.1} parent=5 // pred_region
        %s161 = ssub.s32 %s15, 1
        %s162 = sand.u32 %s70, 1
        %s163 = scalar_lea.sflag [#allocation3], %s162
        %s164 = sand.u32 %s70, 1
        %s165 = smul.addr %s164, 256
        %s166 = scalar_lea.vmem [#allocation2], %s165
        // Predicated region
        $region33: #{tpu_custom_call.1} parent=31 // pred_check
          %p167 = pneg %p83
        $region34: #{tpu_custom_call.1} parent=31 // pred_check_branch
          %169 = sbr.rel (%p167) target = $region36
        $region35: #{tpu_custom_call.1} parent=31 // pred_region
          %170 = dma.done %s163, 4096
        $region36: #{tpu_custom_call.1} parent=31 // pred_fallthru
          _
        %p171 = pneg %p36
        %p172 = pneg %p33
        %p173 = pneg %p57
        %p174 = pneg %p54
        %s175 = sand.u32 %s70, 1
        %s176 = scalar_lea.sflag [#allocation3], %s175
        %s177 = sand.u32 %s70, 1
        %s178 = smul.addr %s177, 256
        %s179 = scalar_lea.vmem [#allocation2], %s178
        %p180 = pneg %p83
        %p181 = pneg %p80
        %p182 = pneg %p109
        %p183 = pneg %p106
        %s184 = sand.u32 %s96, 1
        %s185 = scalar_lea.sflag [#allocation4], %s184
        %s186 = sand.u32 %s96, 1
        %s187 = smul.addr %s186, 256
        %s188 = scalar_lea.vmem [#allocation5], %s187
        %s189 = smul.u32 2, %s20
        %s190 = smul.u32 2, %s20
        %v192 = vld [vmem:[%s0] sm:$0xf]
        %v193 = vld [vmem:[%s0 + $0x4] sm:$0xf]
        %v194 = vld [vmem:[%s0 + $0x8] sm:$0xf]
        %v195 = vld [vmem:[%s0 + $0xc] sm:$0xf]
        %v196 = vld [vmem:[%s0 + $0x10] sm:$0xf]
        %v197 = vld [vmem:[%s0 + $0x14] sm:$0xf]
        %v198 = vld [vmem:[%s0 + $0x18] sm:$0xf]
        %v199 = vld [vmem:[%s0 + $0x1c] sm:$0xf]
        %v200 = vld [vmem:[%s0 + $0x20] sm:$0xf]
        %v201 = vld [vmem:[%s0 + $0x24] sm:$0xf]
        %v202 = vld [vmem:[%s0 + $0x28] sm:$0xf]
        %v203 = vld [vmem:[%s0 + $0x2c] sm:$0xf]
        %v204 = vld [vmem:[%s0 + $0x30] sm:$0xf]
        %v205 = vld [vmem:[%s0 + $0x34] sm:$0xf]
        %v206 = vld [vmem:[%s0 + $0x38] sm:$0xf]
        %v207 = vld [vmem:[%s0 + $0x3c] sm:$0xf]
        %v208 = vld [vmem:[%s166] sm:$0xff]
        %v209 = vld [vmem:[%s166 + $0x8] sm:$0xff]
        %v210 = vld [vmem:[%s166 + $0x10] sm:$0xff]
        %v211 = vld [vmem:[%s166 + $0x18] sm:$0xff]
        %v212 = vld [vmem:[%s166 + $0x20] sm:$0xff]
        %v213 = vld [vmem:[%s166 + $0x28] sm:$0xff]
        %v214 = vld [vmem:[%s166 + $0x30] sm:$0xff]
        %v215 = vld [vmem:[%s166 + $0x38] sm:$0xff]
        %v216 = vld [vmem:[%s166 + $0x40] sm:$0xff]
        %v217 = vld [vmem:[%s166 + $0x48] sm:$0xff]
        %v218 = vld [vmem:[%s166 + $0x50] sm:$0xff]
        %v219 = vld [vmem:[%s166 + $0x58] sm:$0xff]
        %v220 = vld [vmem:[%s166 + $0x60] sm:$0xff]
        %v221 = vld [vmem:[%s166 + $0x68] sm:$0xff]
        %v222 = vld [vmem:[%s166 + $0x70] sm:$0xff]
        %v223 = vld [vmem:[%s166 + $0x78] sm:$0xff]
        %v224 = vld [vmem:[%s166 + $0x80] sm:$0xff]
        %v225 = vld [vmem:[%s166 + $0x88] sm:$0xff]
        %v226 = vld [vmem:[%s166 + $0x90] sm:$0xff]
        %v227 = vld [vmem:[%s166 + $0x98] sm:$0xff]
        %v228 = vld [vmem:[%s166 + $0xa0] sm:$0xff]
        %v229 = vld [vmem:[%s166 + $0xa8] sm:$0xff]
        %v230 = vld [vmem:[%s166 + $0xb0] sm:$0xff]
        %v231 = vld [vmem:[%s166 + $0xb8] sm:$0xff]
        %v232 = vld [vmem:[%s166 + $0xc0] sm:$0xff]
        %v233 = vld [vmem:[%s166 + $0xc8] sm:$0xff]
        %v234 = vld [vmem:[%s166 + $0xd0] sm:$0xff]
        %v235 = vld [vmem:[%s166 + $0xd8] sm:$0xff]
        %v236 = vld [vmem:[%s166 + $0xe0] sm:$0xff]
        %v237 = vld [vmem:[%s166 + $0xe8] sm:$0xff]
        %v238 = vld [vmem:[%s166 + $0xf0] sm:$0xff]
        %v239 = vld [vmem:[%s166 + $0xf8] sm:$0xff]
        %v240 = vld [vmem:[%s1] sm:$0xff]
        %v241 = vld [vmem:[%s1 + $0x8] sm:$0xff]
        %v242 = vld [vmem:[%s1 + $0x10] sm:$0xff]
        %v243 = vld [vmem:[%s1 + $0x18] sm:$0xff]
        %v244 = vld [vmem:[%s1 + $0x20] sm:$0xff]
        %v245 = vld [vmem:[%s1 + $0x28] sm:$0xff]
        %v246 = vld [vmem:[%s1 + $0x30] sm:$0xff]
        %v247 = vld [vmem:[%s1 + $0x38] sm:$0xff]
        %v248 = vld [vmem:[%s1 + $0x40] sm:$0xff]
        %v249 = vld [vmem:[%s1 + $0x48] sm:$0xff]
        %v250 = vld [vmem:[%s1 + $0x50] sm:$0xff]
        %v251 = vld [vmem:[%s1 + $0x58] sm:$0xff]
        %v252 = vld [vmem:[%s1 + $0x60] sm:$0xff]
        %v253 = vld [vmem:[%s1 + $0x68] sm:$0xff]
        %v254 = vld [vmem:[%s1 + $0x70] sm:$0xff]
        %v255 = vld [vmem:[%s1 + $0x78] sm:$0xff]
        %257 = vset.pattern.permute.xlu0 0
        %258 = vperm.xlu0 %257, %v240
        %v259 = vpop.permute.xlu0 %258
        %262 = vset.pattern.permute.xlu0 0
        %263 = vperm.xlu0 %262, %v241
        %v264 = vpop.permute.xlu0 %263
        %267 = vset.pattern.permute.xlu0 0
        %268 = vperm.xlu0 %267, %v242
        %v269 = vpop.permute.xlu0 %268
        %272 = vset.pattern.permute.xlu0 0
        %273 = vperm.xlu0 %272, %v243
        %v274 = vpop.permute.xlu0 %273
        %277 = vset.pattern.permute.xlu0 0
        %278 = vperm.xlu0 %277, %v244
        %v279 = vpop.permute.xlu0 %278
        %282 = vset.pattern.permute.xlu0 0
        %283 = vperm.xlu0 %282, %v245
        %v284 = vpop.permute.xlu0 %283
        %287 = vset.pattern.permute.xlu0 0
        %288 = vperm.xlu0 %287, %v246
        %v289 = vpop.permute.xlu0 %288
        %292 = vset.pattern.permute.xlu0 0
        %293 = vperm.xlu0 %292, %v247
        %v294 = vpop.permute.xlu0 %293
        %297 = vset.pattern.permute.xlu0 0
        %298 = vperm.xlu0 %297, %v248
        %v299 = vpop.permute.xlu0 %298
        %302 = vset.pattern.permute.xlu0 0
        %303 = vperm.xlu0 %302, %v249
        %v304 = vpop.permute.xlu0 %303
        %307 = vset.pattern.permute.xlu0 0
        %308 = vperm.xlu0 %307, %v250
        %v309 = vpop.permute.xlu0 %308
        %312 = vset.pattern.permute.xlu0 0
        %313 = vperm.xlu0 %312, %v251
        %v314 = vpop.permute.xlu0 %313
        %317 = vset.pattern.permute.xlu0 0
        %318 = vperm.xlu0 %317, %v252
        %v319 = vpop.permute.xlu0 %318
        %322 = vset.pattern.permute.xlu0 0
        %323 = vperm.xlu0 %322, %v253
        %v324 = vpop.permute.xlu0 %323
        %327 = vset.pattern.permute.xlu0 0
        %328 = vperm.xlu0 %327, %v254
        %v329 = vpop.permute.xlu0 %328
        %332 = vset.pattern.permute.xlu0 0
        %333 = vperm.xlu0 %332, %v255
        %v334 = vpop.permute.xlu0 %333
        %v336 = vmul.f32 %v208, %v259
        %v337 = vmul.f32 %v209, %v259
        %v338 = vmul.f32 %v210, %v264
        %v339 = vmul.f32 %v211, %v264
        %v340 = vmul.f32 %v212, %v269
        %v341 = vmul.f32 %v213, %v269
        %v342 = vmul.f32 %v214, %v274
        %v343 = vmul.f32 %v215, %v274
        %v344 = vmul.f32 %v216, %v279
        %v345 = vmul.f32 %v217, %v279
        %v346 = vmul.f32 %v218, %v284
        %v347 = vmul.f32 %v219, %v284
        %v348 = vmul.f32 %v220, %v289
        %v349 = vmul.f32 %v221, %v289
        %v350 = vmul.f32 %v222, %v294
        %v351 = vmul.f32 %v223, %v294
        %v352 = vmul.f32 %v224, %v299
        %v353 = vmul.f32 %v225, %v299
        %v354 = vmul.f32 %v226, %v304
        %v355 = vmul.f32 %v227, %v304
        %v356 = vmul.f32 %v228, %v309
        %v357 = vmul.f32 %v229, %v309
        %v358 = vmul.f32 %v230, %v314
        %v359 = vmul.f32 %v231, %v314
        %v360 = vmul.f32 %v232, %v319
        %v361 = vmul.f32 %v233, %v319
        %v362 = vmul.f32 %v234, %v324
        %v363 = vmul.f32 %v235, %v324
        %v364 = vmul.f32 %v236, %v329
        %v365 = vmul.f32 %v237, %v329
        %v366 = vmul.f32 %v238, %v334
        %v367 = vmul.f32 %v239, %v334
        %v368 = vpack.c.bf16 %v210, %v208
        %v369 = vpack.c.bf16 %v211, %v209
        %v370 = vpack.c.bf16 %v214, %v212
        %v371 = vpack.c.bf16 %v215, %v213
        %v372 = vpack.c.bf16 %v218, %v216
        %v373 = vpack.c.bf16 %v219, %v217
        %v374 = vpack.c.bf16 %v222, %v220
        %v375 = vpack.c.bf16 %v223, %v221
        %v376 = vpack.c.bf16 %v226, %v224
        %v377 = vpack.c.bf16 %v227, %v225
        %v378 = vpack.c.bf16 %v230, %v228
        %v379 = vpack.c.bf16 %v231, %v229
        %v380 = vpack.c.bf16 %v234, %v232
        %v381 = vpack.c.bf16 %v235, %v233
        %v382 = vpack.c.bf16 %v238, %v236
        %v383 = vpack.c.bf16 %v239, %v237
        %v400 = vunpack.c.l.b16 %v192
        %v401 = vunpack.c.l.b16 %v193
        %v402 = vunpack.c.l.b16 %v194
        %v403 = vunpack.c.l.b16 %v195
        %v404 = vunpack.c.l.b16 %v196
        %v405 = vunpack.c.l.b16 %v197
        %v406 = vunpack.c.l.b16 %v198
        %v407 = vunpack.c.l.b16 %v199
        %v408 = vunpack.c.l.b16 %v200
        %v409 = vunpack.c.l.b16 %v201
        %v410 = vunpack.c.l.b16 %v202
        %v411 = vunpack.c.l.b16 %v203
        %v412 = vunpack.c.l.b16 %v204
        %v413 = vunpack.c.l.b16 %v205
        %v414 = vunpack.c.l.b16 %v206
        %v415 = vunpack.c.l.b16 %v207
        %v416 = vpack.c.b16 %v401, %v400
        %v417 = vpack.c.b16 %v403, %v402
        %v418 = vpack.c.b16 %v405, %v404
        %v419 = vpack.c.b16 %v407, %v406
        %v420 = vpack.c.b16 %v409, %v408
        %v421 = vpack.c.b16 %v411, %v410
        %v422 = vpack.c.b16 %v413, %v412
        %v423 = vpack.c.b16 %v415, %v414
        %432 = vmatprep.subr.bf16.mxu0 %v369
        %433 = vmatpush1.bf16.msra.mxu0 %v368
        %434 = vmatprep.subr.bf16.mxu0 %v371
        %435 = vmatpush1.bf16.msra.mxu0 %v370
        %436 = vmatprep.subr.bf16.mxu0 %v373
        %437 = vmatpush1.bf16.msra.mxu0 %v372
        %438 = vmatprep.subr.bf16.mxu0 %v375
        %439 = vmatpush1.bf16.msra.mxu0 %v374
        %440 = vmatprep.subr.bf16.mxu0 %v377
        %441 = vmatpush1.bf16.msra.mxu0 %v376
        %442 = vmatprep.subr.bf16.mxu0 %v379
        %443 = vmatpush1.bf16.msra.mxu0 %v378
        %444 = vmatprep.subr.bf16.mxu0 %v381
        %445 = vmatpush1.bf16.msra.mxu0 %v380
        %446 = vmatprep.subr.bf16.mxu0 %v383
        %447 = vmatpush1.bf16.msra.mxu0 %v382
        %448 = vmatprep.subr.bf16.mxu0 0
        %449 = vmatpush1.bf16.msra.mxu0 0
        %450 = vmatprep.subr.bf16.mxu0 0
        %451 = vmatpush1.bf16.msra.mxu0 0
        %452 = vmatprep.subr.bf16.mxu0 0
        %453 = vmatpush1.bf16.msra.mxu0 0
        %454 = vmatprep.subr.bf16.mxu0 0
        %455 = vmatpush1.bf16.msra.mxu0 0
        %456 = vmatprep.subr.bf16.mxu0 0
        %457 = vmatpush1.bf16.msra.mxu0 0
        %458 = vmatprep.subr.bf16.mxu0 0
        %459 = vmatpush1.bf16.msra.mxu0 0
        %460 = vmatprep.subr.bf16.mxu0 0
        %461 = vmatpush1.bf16.msra.mxu0 0
        %462 = vmatprep.subr.bf16.mxu0 0
        %463 = vmatpush1.bf16.msra.mxu0 0
        %464 = vmatprep.mubr.bf16.mxu0 0
        %465 = vmatmul.mubr.bf16.gmra.mrb[0].mxu0 %v416
        %v466 = vpop.f32.mrb[0].mxu0
        %v467 = vadd.f32 %v336, %v466
        %v468 = vpop.f32.mrb[0].mxu0
        %v469 = vadd.f32 %v337, %v468
        %v470 = vpop.f32.mrb[0].mxu0
        %v471 = vadd.f32 %v338, %v470
        %v472 = vpop.f32.mrb[0].mxu0
        %v473 = vadd.f32 %v339, %v472
        %474 = vmatprep.mubr.bf16.mxu0 0
        %475 = vmatmul.mubr.bf16.gmra.mrb[0].mxu0 %v417
        %v476 = vpop.f32.mrb[0].mxu0
        %v477 = vadd.f32 %v340, %v476
        %v478 = vpop.f32.mrb[0].mxu0
        %v479 = vadd.f32 %v341, %v478
        %v480 = vpop.f32.mrb[0].mxu0
        %v481 = vadd.f32 %v342, %v480
        %v482 = vpop.f32.mrb[0].mxu0
        %v483 = vadd.f32 %v343, %v482
        %484 = vmatprep.mubr.bf16.mxu0 0
        %485 = vmatmul.mubr.bf16.gmra.mrb[0].mxu0 %v418
        %v486 = vpop.f32.mrb[0].mxu0
        %v487 = vadd.f32 %v344, %v486
        %v488 = vpop.f32.mrb[0].mxu0
        %v489 = vadd.f32 %v345, %v488
        %v490 = vpop.f32.mrb[0].mxu0
        %v491 = vadd.f32 %v346, %v490
        %v492 = vpop.f32.mrb[0].mxu0
        %v493 = vadd.f32 %v347, %v492
        %494 = vmatprep.mubr.bf16.mxu0 0
        %495 = vmatmul.mubr.bf16.gmra.mrb[0].mxu0 %v419
        %v496 = vpop.f32.mrb[0].mxu0
        %v497 = vadd.f32 %v348, %v496
        %v498 = vpop.f32.mrb[0].mxu0
        %v499 = vadd.f32 %v349, %v498
        %v500 = vpop.f32.mrb[0].mxu0
        %v501 = vadd.f32 %v350, %v500
        %v502 = vpop.f32.mrb[0].mxu0
        %v503 = vadd.f32 %v351, %v502
        %504 = vmatprep.mubr.bf16.mxu0 0
        %505 = vmatmul.mubr.bf16.gmra.mrb[0].mxu0 %v420
        %v506 = vpop.f32.mrb[0].mxu0
        %v507 = vadd.f32 %v352, %v506
        %v508 = vpop.f32.mrb[0].mxu0
        %v509 = vadd.f32 %v353, %v508
        %v510 = vpop.f32.mrb[0].mxu0
        %v511 = vadd.f32 %v354, %v510
        %v512 = vpop.f32.mrb[0].mxu0
        %v513 = vadd.f32 %v355, %v512
        %514 = vmatprep.mubr.bf16.mxu0 0
        %515 = vmatmul.mubr.bf16.gmra.mrb[0].mxu0 %v421
        %v516 = vpop.f32.mrb[0].mxu0
        %v517 = vadd.f32 %v356, %v516
        %v518 = vpop.f32.mrb[0].mxu0
        %v519 = vadd.f32 %v357, %v518
        %v520 = vpop.f32.mrb[0].mxu0
        %v521 = vadd.f32 %v358, %v520
        %v522 = vpop.f32.mrb[0].mxu0
        %v523 = vadd.f32 %v359, %v522
        %524 = vmatprep.mubr.bf16.mxu0 0
        %525 = vmatmul.mubr.bf16.gmra.mrb[0].mxu0 %v422
        %v526 = vpop.f32.mrb[0].mxu0
        %v527 = vadd.f32 %v360, %v526
        %v528 = vpop.f32.mrb[0].mxu0
        %v529 = vadd.f32 %v361, %v528
        %v530 = vpop.f32.mrb[0].mxu0
        %v531 = vadd.f32 %v362, %v530
        %v532 = vpop.f32.mrb[0].mxu0
        %v533 = vadd.f32 %v363, %v532
        %534 = vmatprep.mubr.bf16.mxu0 0
        %535 = vmatmul.mubr.bf16.gmra.mrb[0].mxu0 %v423
        %v536 = vpop.f32.mrb[0].mxu0
        %v537 = vadd.f32 %v364, %v536
        %v538 = vpop.f32.mrb[0].mxu0
        %v539 = vadd.f32 %v365, %v538
        %v540 = vpop.f32.mrb[0].mxu0
        %v541 = vadd.f32 %v366, %v540
        %v542 = vpop.f32.mrb[0].mxu0
        %v543 = vadd.f32 %v367, %v542
        %544 = vdwg.mxu0
        %v545 = vpack.c.bf16 %v471, %v467
        %v546 = vpack.c.bf16 %v473, %v469
        %v547 = vpack.c.bf16 %v481, %v477
        %v548 = vpack.c.bf16 %v483, %v479
        %v549 = vpack.c.bf16 %v491, %v487
        %v550 = vpack.c.bf16 %v493, %v489
        %v551 = vpack.c.bf16 %v501, %v497
        %v552 = vpack.c.bf16 %v503, %v499
        %v553 = vpack.c.bf16 %v511, %v507
        %v554 = vpack.c.bf16 %v513, %v509
        %v555 = vpack.c.bf16 %v521, %v517
        %v556 = vpack.c.bf16 %v523, %v519
        %v557 = vpack.c.bf16 %v531, %v527
        %v558 = vpack.c.bf16 %v533, %v529
        %v559 = vpack.c.bf16 %v541, %v537
        %v560 = vpack.c.bf16 %v543, %v539
        %561 = vmatprep.subr.bf16.mxu0 %v546
        %562 = vmatpush1.bf16.msra.mxu0 %v545
        %563 = vmatprep.subr.bf16.mxu0 %v548
        %564 = vmatpush1.bf16.msra.mxu0 %v547
        %565 = vmatprep.subr.bf16.mxu0 %v550
        %566 = vmatpush1.bf16.msra.mxu0 %v549
        %567 = vmatprep.subr.bf16.mxu0 %v552
        %568 = vmatpush1.bf16.msra.mxu0 %v551
        %569 = vmatprep.subr.bf16.mxu0 %v554
        %570 = vmatpush1.bf16.msra.mxu0 %v553
        %571 = vmatprep.subr.bf16.mxu0 %v556
        %572 = vmatpush1.bf16.msra.mxu0 %v555
        %573 = vmatprep.subr.bf16.mxu0 %v558
        %574 = vmatpush1.bf16.msra.mxu0 %v557
        %575 = vmatprep.subr.bf16.mxu0 %v560
        %576 = vmatpush1.bf16.msra.mxu0 %v559
        %577 = vmatprep.subr.bf16.mxu0 0
        %578 = vmatpush1.bf16.msra.mxu0 0
        %579 = vmatprep.subr.bf16.mxu0 0
        %580 = vmatpush1.bf16.msra.mxu0 0
        %581 = vmatprep.subr.bf16.mxu0 0
        %582 = vmatpush1.bf16.msra.mxu0 0
        %583 = vmatprep.subr.bf16.mxu0 0
        %584 = vmatpush1.bf16.msra.mxu0 0
        %585 = vmatprep.subr.bf16.mxu0 0
        %586 = vmatpush1.bf16.msra.mxu0 0
        %587 = vmatprep.subr.bf16.mxu0 0
        %588 = vmatpush1.bf16.msra.mxu0 0
        %589 = vmatprep.subr.bf16.mxu0 0
        %590 = vmatpush1.bf16.msra.mxu0 0
        %591 = vmatprep.subr.bf16.mxu0 0
        %592 = vmatpush1.bf16.msra.mxu0 0
        %593 = vmatprep.mubr.bf16.mxu0 0
        %594 = vmatmul.mubr.bf16.gmra.mrb[0].mxu0 %v416
        %v595 = vpop.f32.mrb[0].mxu0
        %v596 = vadd.f32 %v336, %v595
        %v597 = vpop.f32.mrb[0].mxu0
        %v598 = vadd.f32 %v337, %v597
        %v599 = vpop.f32.mrb[0].mxu0
        %v600 = vadd.f32 %v338, %v599
        %v601 = vpop.f32.mrb[0].mxu0
        %v602 = vadd.f32 %v339, %v601
        %603 = vmatprep.mubr.bf16.mxu0 0
        %604 = vmatmul.mubr.bf16.gmra.mrb[0].mxu0 %v417
        %v605 = vpop.f32.mrb[0].mxu0
        %v606 = vadd.f32 %v340, %v605
        %v607 = vpop.f32.mrb[0].mxu0
        %v608 = vadd.f32 %v341, %v607
        %v609 = vpop.f32.mrb[0].mxu0
        %v610 = vadd.f32 %v342, %v609
        %v611 = vpop.f32.mrb[0].mxu0
        %v612 = vadd.f32 %v343, %v611
        %613 = vmatprep.mubr.bf16.mxu0 0
        %614 = vmatmul.mubr.bf16.gmra.mrb[0].mxu0 %v418
        %v615 = vpop.f32.mrb[0].mxu0
        %v616 = vadd.f32 %v344, %v615
        %v617 = vpop.f32.mrb[0].mxu0
        %v618 = vadd.f32 %v345, %v617
        %v619 = vpop.f32.mrb[0].mxu0
        %v620 = vadd.f32 %v346, %v619
        %v621 = vpop.f32.mrb[0].mxu0
        %v622 = vadd.f32 %v347, %v621
        %623 = vmatprep.mubr.bf16.mxu0 0
        %624 = vmatmul.mubr.bf16.gmra.mrb[0].mxu0 %v419
        %v625 = vpop.f32.mrb[0].mxu0
        %v626 = vadd.f32 %v348, %v625
        %v627 = vpop.f32.mrb[0].mxu0
        %v628 = vadd.f32 %v349, %v627
        %v629 = vpop.f32.mrb[0].mxu0
        %v630 = vadd.f32 %v350, %v629
        %v631 = vpop.f32.mrb[0].mxu0
        %v632 = vadd.f32 %v351, %v631
        %633 = vmatprep.mubr.bf16.mxu0 0
        %634 = vmatmul.mubr.bf16.gmra.mrb[0].mxu0 %v420
        %v635 = vpop.f32.mrb[0].mxu0
        %v636 = vadd.f32 %v352, %v635
        %v637 = vpop.f32.mrb[0].mxu0
        %v638 = vadd.f32 %v353, %v637
        %v639 = vpop.f32.mrb[0].mxu0
        %v640 = vadd.f32 %v354, %v639
        %v641 = vpop.f32.mrb[0].mxu0
        %v642 = vadd.f32 %v355, %v641
        %643 = vmatprep.mubr.bf16.mxu0 0
        %644 = vmatmul.mubr.bf16.gmra.mrb[0].mxu0 %v421
        %v645 = vpop.f32.mrb[0].mxu0
        %v646 = vadd.f32 %v356, %v645
        %v647 = vpop.f32.mrb[0].mxu0
        %v648 = vadd.f32 %v357, %v647
        %v649 = vpop.f32.mrb[0].mxu0
        %v650 = vadd.f32 %v358, %v649
        %v651 = vpop.f32.mrb[0].mxu0
        %v652 = vadd.f32 %v359, %v651
        %653 = vmatprep.mubr.bf16.mxu0 0
        %654 = vmatmul.mubr.bf16.gmra.mrb[0].mxu0 %v422
        %v655 = vpop.f32.mrb[0].mxu0
        %v656 = vadd.f32 %v360, %v655
        %v657 = vpop.f32.mrb[0].mxu0
        %v658 = vadd.f32 %v361, %v657
        %v659 = vpop.f32.mrb[0].mxu0
        %v660 = vadd.f32 %v362, %v659
        %v661 = vpop.f32.mrb[0].mxu0
        %v662 = vadd.f32 %v363, %v661
        %663 = vmatprep.mubr.bf16.mxu0 0
        %664 = vmatmul.mubr.bf16.gmra.mrb[0].mxu0 %v423
        %v665 = vpop.f32.mrb[0].mxu0
        %v666 = vadd.f32 %v364, %v665
        %v667 = vpop.f32.mrb[0].mxu0
        %v668 = vadd.f32 %v365, %v667
        %v669 = vpop.f32.mrb[0].mxu0
        %v670 = vadd.f32 %v366, %v669
        %v671 = vpop.f32.mrb[0].mxu0
        %v672 = vadd.f32 %v367, %v671
        %673 = vdwg.mxu0
        %674 = vst [vmem:[%s188] sm:$0xff] %v596
        %675 = vst [vmem:[%s188 + $0x8] sm:$0xff] %v598
        %676 = vst [vmem:[%s188 + $0x10] sm:$0xff] %v600
        %677 = vst [vmem:[%s188 + $0x18] sm:$0xff] %v602
        %678 = vst [vmem:[%s188 + $0x20] sm:$0xff] %v606
        %679 = vst [vmem:[%s188 + $0x28] sm:$0xff] %v608
        %680 = vst [vmem:[%s188 + $0x30] sm:$0xff] %v610
        %681 = vst [vmem:[%s188 + $0x38] sm:$0xff] %v612
        %682 = vst [vmem:[%s188 + $0x40] sm:$0xff] %v616
        %683 = vst [vmem:[%s188 + $0x48] sm:$0xff] %v618
        %684 = vst [vmem:[%s188 + $0x50] sm:$0xff] %v620
        %685 = vst [vmem:[%s188 + $0x58] sm:$0xff] %v622
        %686 = vst [vmem:[%s188 + $0x60] sm:$0xff] %v626
        %687 = vst [vmem:[%s188 + $0x68] sm:$0xff] %v628
        %688 = vst [vmem:[%s188 + $0x70] sm:$0xff] %v630
        %689 = vst [vmem:[%s188 + $0x78] sm:$0xff] %v632
        %690 = vst [vmem:[%s188 + $0x80] sm:$0xff] %v636
        %691 = vst [vmem:[%s188 + $0x88] sm:$0xff] %v638
        %692 = vst [vmem:[%s188 + $0x90] sm:$0xff] %v640
        %693 = vst [vmem:[%s188 + $0x98] sm:$0xff] %v642
        %694 = vst [vmem:[%s188 + $0xa0] sm:$0xff] %v646
        %695 = vst [vmem:[%s188 + $0xa8] sm:$0xff] %v648
        %696 = vst [vmem:[%s188 + $0xb0] sm:$0xff] %v650
        %697 = vst [vmem:[%s188 + $0xb8] sm:$0xff] %v652
        %698 = vst [vmem:[%s188 + $0xc0] sm:$0xff] %v656
        %699 = vst [vmem:[%s188 + $0xc8] sm:$0xff] %v658
        %700 = vst [vmem:[%s188 + $0xd0] sm:$0xff] %v660
        %701 = vst [vmem:[%s188 + $0xd8] sm:$0xff] %v662
        %702 = vst [vmem:[%s188 + $0xe0] sm:$0xff] %v666
        %703 = vst [vmem:[%s188 + $0xe8] sm:$0xff] %v668
        %704 = vst [vmem:[%s188 + $0xf0] sm:$0xff] %v670
        %705 = vst [vmem:[%s188 + $0xf8] sm:$0xff] %v672
        %s706 = sand.u32 %s96, 1
        %s707 = scalar_lea.sflag [#allocation4], %s706
        %s708 = sand.u32 %s96, 1
        %s709 = smul.addr %s708, 256
        %s710 = scalar_lea.vmem [#allocation5], %s709
        // Predicated region
        $region37: #{tpu_custom_call.1} parent=31 // pred_check
          %p711 = pneg %p106
        $region38: #{tpu_custom_call.1} parent=31 // pred_check_branch
          %713 = sbr.rel (%p711) target = $region40
        $region39: #{tpu_custom_call.1} parent=31 // pred_region
          %s714 = smul.u32 2, %s20
          %s716 = ssub.s32 4096, 4096
          %717 = vsyncadd %s707, %s716
          %s718 = smul.addr %s714, 128
          %s719 = scalar_lea.hbm %s3, %s718
          %s720 = sshll.u32 %s710, 4
          %s721 = int_to_ptr.vmem [resolvable:$true] %s720
          %726 = dma.vmem_to_hbm [thread:$0]  %s721, 4096, %s719, %s707, 256, 512, 16
        $region40: #{tpu_custom_call.1} parent=31 // pred_fallthru
          _
      $region32: #{tpu_custom_call.1} parent=5 // pred_fallthru
        _
      %p727 = scmp.le.s32.totalorder 2, %s15
      // Predicated region
      $region41: #{tpu_custom_call.1} parent=5 // pred_check
        %p728 = pneg %p727
      $region42: #{tpu_custom_call.1} parent=5 // pred_check_branch
        %730 = sbr.rel (%p728) target = $region44
      $region43: #{tpu_custom_call.1} parent=5 // pred_region
        %s731 = ssub.s32 %s15, 2
        // Predicated region
        $region45: #{tpu_custom_call.1} parent=43 // pred_check
          %p732 = pneg %p112
        $region46: #{tpu_custom_call.1} parent=43 // pred_check_branch
          %734 = sbr.rel (%p732) target = $region48
        $region47: #{tpu_custom_call.1} parent=43 // pred_region
          %s735 = sand.u32 %s97, 1
          %s736 = scalar_lea.sflag [#allocation4], %s735
          %s737 = sand.u32 %s97, 1
          %s738 = smul.addr %s737, 256
          %s739 = scalar_lea.vmem [#allocation5], %s738
          %740 = dma.done %s736, 4096
        $region48: #{tpu_custom_call.1} parent=43 // pred_fallthru
          _
      $region44: #{tpu_custom_call.1} parent=5 // pred_fallthru
        _
    $region6: #{tpu_custom_call.1} parent=1 // loop_footer
      %s19 = sadd.s32 1, %s15
    $region7: #{tpu_custom_call.1} parent=1 // loop_footer_branch
      %14 = sbr.rel target = $region3
    $region8: #{tpu_custom_call.1} parent=1 // loop_exit
      _
    %741 = vsyncpa [#allocation3], 1
    %s742 = scalar_lea.sflag [#allocation3], 1
    %743 = vsyncpa %s742, 1
    %744 = vsyncpa [#allocation4], 1
    %s745 = scalar_lea.sflag [#allocation4], 1
    %746 = vsyncpa %s745, 1

</llo_original>
